<compile_context>
chip_gen: v5e
topology: v5e:2x2
jax: 0.10.0
libtpu: 0.0.40
codegen_flags: <defaults>
</compile_context>

<pallas_src>
import functools

import jax
import jax.numpy as jnp
from jax.experimental import pallas as pl
from jax.experimental.pallas import tpu as pltpu

LANE = 128  # per-block column stride in the packed param slab (lane-tile aligned)


def encoder_kernel(x_ref, p_ref, out_ref, *, D_in, H, D_out, bias_row):
    """Fused 3-layer MLP encoder. p_ref is the packed weight/bias slab:

        p[0:D_in , 0      : H        ]   = W1   (D_in, H)
        p[0:H    , LANE   : LANE+32  ]   = W2   (H, 32)
        p[0:32   , 2*LANE : 2*LANE+2*D_out] = [Wmu | Wls]  (32, 2*D_out)
        p[bias_row, <same column ranges>] = b1 | b2 | [bmu | bls]
    """
    x = x_ref[...]                                              # (B, D_in)

    # Linear1 + ReLU
    w1 = p_ref[0:D_in, 0:H]
    b1 = p_ref[bias_row:bias_row + 1, 0:H]
    h1 = jnp.dot(x, w1, preferred_element_type=jnp.float32) + b1
    h1 = jnp.maximum(h1, 0.0)

    # Linear2 + ReLU
    w2 = p_ref[0:H, LANE:LANE + 32]
    b2 = p_ref[bias_row:bias_row + 1, LANE:LANE + 32]
    h2 = jnp.dot(h1, w2, preferred_element_type=jnp.float32) + b2
    h2 = jnp.maximum(h2, 0.0)

    # Fused heads: [mu | log_sigma] in one matmul / one output store.
    wh = p_ref[0:32, 2 * LANE:2 * LANE + 2 * D_out]
    bh = p_ref[bias_row:bias_row + 1, 2 * LANE:2 * LANE + 2 * D_out]
    out_ref[...] = (jnp.dot(h2, wh, preferred_element_type=jnp.float32)
                    + bh).astype(out_ref.dtype)


@functools.partial(jax.jit, static_argnames=("D_in", "H", "D_out"))
def encoder_forward(x, packed, *, D_in, H, D_out):
    """x: (B, D_in) f32. packed: pre-packed param slab from pack_params()."""
    B = x.shape[0]
    bias_row = max(D_in, H, 32)

    kernel = functools.partial(encoder_kernel, D_in=D_in, H=H, D_out=D_out,
                               bias_row=bias_row)

    # Gridless: single invocation, every operand a whole-array VMEM block.
    # (If B ever scales to thousands of rows, switch to a 1-D grid over rows
    #  with >=512-row blocks and dimension_semantics=("parallel",) — 2x on
    #  v7x's dual TensorCores.)
    out = pl.pallas_call(
        kernel,
        out_shape=jax.ShapeDtypeStruct((B, 2 * D_out), jnp.float32),
        in_specs=[
            pl.BlockSpec(memory_space=pltpu.MemorySpace.VMEM),   # x
            pl.BlockSpec(memory_space=pltpu.MemorySpace.VMEM),   # param slab
        ],
        out_specs=pl.BlockSpec(memory_space=pltpu.MemorySpace.VMEM),
    )(x, packed)

    mu = out[:, :D_out]
    log_sigma = out[:, D_out:]
    return mu, log_sigma


def pack_params(p, D_in, H, D_out):
    """Pack all weights/biases into one lane-aligned f32 slab (done once)."""
    bias_row = max(D_in, H, 32)
    rows = ((bias_row + 1 + 7) // 8) * 8      # pad sublanes to a multiple of 8
    cols = 3 * LANE                           # one 128-lane tile per weight block
    slab = jnp.zeros((rows, cols), jnp.float32)
    # Weights (already stored as (in_features, out_features)).
    slab = slab.at[0:D_in, 0:H].set(p["w1"])
    slab = slab.at[0:H, LANE:LANE + 32].set(p["w2"])
    slab = slab.at[0:32, 2 * LANE:2 * LANE + D_out].set(p["wmu"])
    slab = slab.at[0:32, 2 * LANE + D_out:2 * LANE + 2 * D_out].set(p["wls"])
    # Biases in one extra row.
    slab = slab.at[bias_row, 0:H].set(p["b1"][0])
    slab = slab.at[bias_row, LANE:LANE + 32].set(p["b2"][0])
    slab = slab.at[bias_row, 2 * LANE:2 * LANE + D_out].set(p["bmu"][0])
    slab = slab.at[bias_row, 2 * LANE + D_out:2 * LANE + 2 * D_out].set(p["bls"][0])
    return slab


def init_params(key, D_in, H, D_out):
    """Init mimicking PyTorch Linear default (U[-1/sqrt(fan_in), +1/sqrt(fan_in)]).

    Weights are stored as (in_features, out_features) — transposed relative to
    torch.nn.Linear.weight — so the kernel computes x @ W directly.  The packed
    VMEM slab is built here (once), not on the forward path.
    """
    ks = jax.random.split(key, 8)

    def linear(kw, kb, fan_in, fan_out):
        bound = 1.0 / jnp.sqrt(fan_in)
        w = jax.random.uniform(kw, (fan_in, fan_out), jnp.float32, -bound, bound)
        b = jax.random.uniform(kb, (1, fan_out), jnp.float32, -bound, bound)
        return w, b

    w1, b1 = linear(ks[0], ks[1], D_in, H)
    w2, b2 = linear(ks[2], ks[3], H, 32)
    wmu, bmu = linear(ks[4], ks[5], 32, D_out)
    wls, bls = linear(ks[6], ks[7], 32, D_out)
    params = dict(w1=w1, b1=b1, w2=w2, b2=b2,
                  wmu=wmu, bmu=bmu, wls=wls, bls=bls)
    params["packed"] = pack_params(params, D_in, H, D_out)
    return params


def encoder_ref(x, p):
    """Pure-JAX reference for correctness check."""
    h1 = jnp.maximum(x @ p["w1"] + p["b1"], 0.0)
    h2 = jnp.maximum(h1 @ p["w2"] + p["b2"], 0.0)
    return h2 @ p["wmu"] + p["bmu"], h2 @ p["wls"] + p["bls"]


if __name__ == "__main__":
    B, D_in, H, D_out = 64, 16, 32, 8
    key = jax.random.PRNGKey(0)
    kx, kp = jax.random.split(key)

    x = jax.random.normal(kx, (B, D_in), jnp.float32)
    params = init_params(kp, D_in, H, D_out)

    mu, log_sigma = encoder_forward(x, params["packed"],
                                    D_in=D_in, H=H, D_out=D_out)
    jax.block_until_ready((mu, log_sigma))

    mu_ref, ls_ref = encoder_ref(x, params)
    assert mu.shape == (B, D_out) and log_sigma.shape == (B, D_out)
    assert jnp.allclose(mu, mu_ref, atol=1e-5, rtol=1e-5)
    assert jnp.allclose(log_sigma, ls_ref, atol=1e-5, rtol=1e-5)

    print("KERNEL_OK")
</pallas_src>

<mosaic_0001>
module attributes {stable_mosaic.version = 11 : i64} {
  func.func @encoder_kernel(%arg0: memref<64x16xf32, #tpu.memory_space<vmem>>, %arg1: memref<40x384xf32, #tpu.memory_space<vmem>>, %arg2: memref<64x16xf32, #tpu.memory_space<vmem>>) attributes {dimension_semantics = [], scalar_prefetch = 0 : i64, scratch_operands = 0 : i64, tpu.core_type = #tpu.core_type<tc>} {
    %c0 = arith.constant 0 : index
    %c0_0 = arith.constant 0 : index
    %0 = vector.load %arg0[%c0, %c0_0] : memref<64x16xf32, #tpu.memory_space<vmem>>, vector<64x16xf32>
    %c0_1 = arith.constant 0 : index
    %c0_2 = arith.constant 0 : index
    %1 = vector.load %arg1[%c0_1, %c0_2] : memref<40x384xf32, #tpu.memory_space<vmem>>, vector<16x32xf32>
    %c32 = arith.constant 32 : index
    %c0_3 = arith.constant 0 : index
    %2 = vector.load %arg1[%c32, %c0_3] : memref<40x384xf32, #tpu.memory_space<vmem>>, vector<1x32xf32>
    %cst = arith.constant dense<0.000000e+00> : vector<64x32xf32>
    %3 = tpu.matmul %0, %1, %cst {dimension_numbers = #tpu.dot_dimension_numbers<[1], [0], [0], [1], [0, 0, 1, 1], [], []>} : vector<64x16xf32>, vector<16x32xf32>, vector<64x32xf32> -> vector<64x32xf32>
    %4 = vector.broadcast %2 : vector<1x32xf32> to vector<64x32xf32>
    %5 = arith.addf %3, %4 : vector<64x32xf32>
    %cst_4 = arith.constant 0.000000e+00 : f32
    %6 = vector.broadcast %cst_4 : f32 to vector<64x32xf32>
    %7 = arith.maximumf %5, %6 : vector<64x32xf32>
    %c0_5 = arith.constant 0 : index
    %c128 = arith.constant 128 : index
    %8 = vector.load %arg1[%c0_5, %c128] : memref<40x384xf32, #tpu.memory_space<vmem>>, vector<32x32xf32>
    %c32_6 = arith.constant 32 : index
    %c128_7 = arith.constant 128 : index
    %9 = vector.load %arg1[%c32_6, %c128_7] : memref<40x384xf32, #tpu.memory_space<vmem>>, vector<1x32xf32>
    %cst_8 = arith.constant dense<0.000000e+00> : vector<64x32xf32>
    %10 = tpu.matmul %7, %8, %cst_8 {dimension_numbers = #tpu.dot_dimension_numbers<[1], [0], [0], [1], [0, 0, 1, 1], [], []>} : vector<64x32xf32>, vector<32x32xf32>, vector<64x32xf32> -> vector<64x32xf32>
    %11 = vector.broadcast %9 : vector<1x32xf32> to vector<64x32xf32>
    %12 = arith.addf %10, %11 : vector<64x32xf32>
    %cst_9 = arith.constant 0.000000e+00 : f32
    %13 = vector.broadcast %cst_9 : f32 to vector<64x32xf32>
    %14 = arith.maximumf %12, %13 : vector<64x32xf32>
    %c0_10 = arith.constant 0 : index
    %c256 = arith.constant 256 : index
    %15 = vector.load %arg1[%c0_10, %c256] : memref<40x384xf32, #tpu.memory_space<vmem>>, vector<32x16xf32>
    %c32_11 = arith.constant 32 : index
    %c256_12 = arith.constant 256 : index
    %16 = vector.load %arg1[%c32_11, %c256_12] : memref<40x384xf32, #tpu.memory_space<vmem>>, vector<1x16xf32>
    %cst_13 = arith.constant dense<0.000000e+00> : vector<64x16xf32>
    %17 = tpu.matmul %14, %15, %cst_13 {dimension_numbers = #tpu.dot_dimension_numbers<[1], [0], [0], [1], [0, 0, 1, 1], [], []>} : vector<64x32xf32>, vector<32x16xf32>, vector<64x16xf32> -> vector<64x16xf32>
    %18 = vector.broadcast %16 : vector<1x16xf32> to vector<64x16xf32>
    %19 = arith.addf %17, %18 : vector<64x16xf32>
    %c0_14 = arith.constant 0 : index
    %c0_15 = arith.constant 0 : index
    %20 = vector.load %arg2[%c0_14, %c0_15] : memref<64x16xf32, #tpu.memory_space<vmem>>, vector<64x16xf32>
    tpu.vector_store %arg2[%c0_14, %c0_15], %19 {strides = array<i32>} : memref<64x16xf32, #tpu.memory_space<vmem>>, vector<64x16xf32>,
    return
  }
}

</mosaic_0001>

<llo_original>
// kernel: encoder_forward.1
$region0: #{encoder_forward.1}
  #allocation0 [shape = 'u32[]', space=smem, size = 0x4, offset = 0x4, fixed_abs, tag = 'smem constant byte address 0x4 - core index']
  #allocation1 [shape = 'u32[72,128]{1,0:T(1,128)}', space=vmem, size = 0x9000, scoped, tag = 'internal scratch']
  %s0 = inlined_call_operand.vmem [shape: f32[64,16], index: 0, kind: input, shape index: {}]
  %s1 = inlined_call_operand.hbm [shape: f32[40,384], index: 1, kind: input, shape index: {}]
  %s2 = inlined_call_operand.vmem [shape: f32[64,16], index: 2, kind: output, shape index: {}]
  %s3 = sld [smem:[#allocation0]]
  $region22: #{encoder_forward.1} parent=0
    _
  %s5 = ssub.s32 1, %s3
  %s6 = scalar_select 0, %s5, %s3
  $region1: #{encoder_forward.1} parent=0
    #allocation2 [shape = 'u8[61440]{0}', space=vmem, size = 0xf000, scoped, tag = 'input window, operand 1, single buffered']
    #allocation3 [shape = 's32[1]{0}', space=sflag, size = 0x4, scoped, tag = 'scoped memory for encoder_forward.1']
    %7 = vsyncpa [#allocation3], 0
    // Predicated region
    $region2: #{encoder_forward.1} parent=1 // pred_check
      _
    $region3: #{encoder_forward.1} parent=1 // pred_check_branch
      %9 = sbr.rel (0) target = $region5
    $region4: #{encoder_forward.1} parent=1 // pred_region
      _
    $region5: #{encoder_forward.1} parent=1 // pred_fallthru
      _
    // Predicated region
    $region6: #{encoder_forward.1} parent=1 // pred_check
      _
    $region7: #{encoder_forward.1} parent=1 // pred_check_branch
      %11 = sbr.rel (0) target = $region9
    $region8: #{encoder_forward.1} parent=1 // pred_region
      %13 = vsyncadd [#allocation3], 0
      %s14 = sshll.u32 %s1, 4
      %s15 = int_to_ptr.hbm [resolvable:$true] %s14
      %s16 = sshll.u32 [#allocation2], 4
      %s17 = int_to_ptr.vmem [resolvable:$true] %s16
      %22 = dma.hbm_to_vmem [thread:$0]  %s15, 1920, %s17, [#allocation3], 384, 384, 24
    $region9: #{encoder_forward.1} parent=1 // pred_fallthru
      _
    // Predicated region
    $region10: #{encoder_forward.1} parent=1 // pred_check
      _
    $region11: #{encoder_forward.1} parent=1 // pred_check_branch
      %24 = sbr.rel (0) target = $region13
    $region12: #{encoder_forward.1} parent=1 // pred_region
      %26 = dma.done [#allocation3], 1920
    $region13: #{encoder_forward.1} parent=1 // pred_fallthru
      _
    %v27 = vld [vmem:[%s0] sm:$0xff]
    %v28 = vld [vmem:[%s0 + $0x8] sm:$0xff]
    %v29 = vld [vmem:[%s0 + $0x10] sm:$0xff]
    %v30 = vld [vmem:[%s0 + $0x18] sm:$0xff]
    %v31 = vld [vmem:[%s0 + $0x20] sm:$0xff]
    %v32 = vld [vmem:[%s0 + $0x28] sm:$0xff]
    %v33 = vld [vmem:[%s0 + $0x30] sm:$0xff]
    %v34 = vld [vmem:[%s0 + $0x38] sm:$0xff]
    %v35 = vld [vmem:[#allocation2] sm:$0xff]
    %v36 = vld [vmem:[#allocation2 + $0x18] sm:$0xff]
    %v37 = vld [vmem:[#allocation2 + $0x60] ss:$0 sm:$0xff]
    %vm38 = vcmask 130048
    %v40 = vsel %vm38, %v27, 0
    %v43 = vsel %vm38, %v28, 0
    %v46 = vsel %vm38, %v29, 0
    %v49 = vsel %vm38, %v30, 0
    %v52 = vsel %vm38, %v31, 0
    %v55 = vsel %vm38, %v32, 0
    %v58 = vsel %vm38, %v33, 0
    %v61 = vsel %vm38, %v34, 0
    %63 = vmatpush.msra.mxu0 0.0
    %64 = vmatpush.msra.mxu0 0.0
    %65 = vmatpush.msra.mxu0 0.0
    %66 = vmatpush.msra.mxu0 0.0
    %67 = vmatpush.msra.mxu0 0.0
    %68 = vmatpush.msra.mxu0 0.0
    %69 = vmatpush.msra.mxu0 0.0
    %70 = vmatpush.msra.mxu0 0.0
    %71 = vmatpush.msra.mxu0 0.0
    %72 = vmatpush.msra.mxu0 0.0
    %73 = vmatpush.msra.mxu0 0.0
    %74 = vmatpush.msra.mxu0 0.0
    %75 = vmatpush.msra.mxu0 0.0
    %76 = vmatpush.msra.mxu0 0.0
    %77 = vmatpush.msra.mxu0 %v36
    %78 = vmatpush.msra.mxu0 %v35
    %79 = vmatmul.f32.gmra.mxu0 %v40
    %v80 = vpop.f32.mrf.mxu0
    %v81 = vadd.f32 %v37, %v80
    %82 = vmatmul.f32.gmra.mxu0 %v43
    %v83 = vpop.f32.mrf.mxu0
    %v84 = vadd.f32 %v37, %v83
    %85 = vmatmul.f32.gmra.mxu0 %v46
    %v86 = vpop.f32.mrf.mxu0
    %v87 = vadd.f32 %v37, %v86
    %88 = vmatmul.f32.gmra.mxu0 %v49
    %v89 = vpop.f32.mrf.mxu0
    %v90 = vadd.f32 %v37, %v89
    %91 = vmatmul.f32.gmra.mxu0 %v52
    %v92 = vpop.f32.mrf.mxu0
    %v93 = vadd.f32 %v37, %v92
    %94 = vmatmul.f32.gmra.mxu0 %v55
    %v95 = vpop.f32.mrf.mxu0
    %v96 = vadd.f32 %v37, %v95
    %97 = vmatmul.f32.gmra.mxu0 %v58
    %v98 = vpop.f32.mrf.mxu0
    %v99 = vadd.f32 %v37, %v98
    %100 = vmatmul.f32.gmra.mxu0 %v61
    %v101 = vpop.f32.mrf.mxu0
    %v102 = vadd.f32 %v37, %v101
    %103 = vdwg.mxu0
    %v104 = vmax.f32 %v81, 0.0
    %v105 = vmax.f32 %v84, 0.0
    %v106 = vmax.f32 %v87, 0.0
    %v107 = vmax.f32 %v90, 0.0
    %v108 = vmax.f32 %v93, 0.0
    %v109 = vmax.f32 %v96, 0.0
    %v110 = vmax.f32 %v99, 0.0
    %v111 = vmax.f32 %v102, 0.0
    %v112 = vld [vmem:[#allocation2 + $0x8] sm:$0xff]
    %v113 = vld [vmem:[#allocation2 + $0x20] sm:$0xff]
    %v114 = vld [vmem:[#allocation2 + $0x38] sm:$0xff]
    %v115 = vld [vmem:[#allocation2 + $0x50] sm:$0xff]
    %v116 = vld [vmem:[#allocation2 + $0x68] ss:$0 sm:$0xff]
    %vm117 = vcmask 261120
    %v119 = vsel %vm117, %v104, 0
    %v122 = vsel %vm117, %v105, 0
    %v125 = vsel %vm117, %v106, 0
    %v128 = vsel %vm117, %v107, 0
    %v131 = vsel %vm117, %v108, 0
    %v134 = vsel %vm117, %v109, 0
    %v137 = vsel %vm117, %v110, 0
    %v140 = vsel %vm117, %v111, 0
    %142 = vmatpush.msra.mxu0 0.0
    %143 = vmatpush.msra.mxu0 0.0
    %144 = vmatpush.msra.mxu0 0.0
    %145 = vmatpush.msra.mxu0 0.0
    %146 = vmatpush.msra.mxu0 0.0
    %147 = vmatpush.msra.mxu0 0.0
    %148 = vmatpush.msra.mxu0 0.0
    %149 = vmatpush.msra.mxu0 0.0
    %150 = vmatpush.msra.mxu0 0.0
    %151 = vmatpush.msra.mxu0 0.0
    %152 = vmatpush.msra.mxu0 0.0
    %153 = vmatpush.msra.mxu0 0.0
    %154 = vmatpush.msra.mxu0 %v115
    %155 = vmatpush.msra.mxu0 %v114
    %156 = vmatpush.msra.mxu0 %v113
    %157 = vmatpush.msra.mxu0 %v112
    %158 = vmatmul.f32.gmra.mxu0 %v119
    %v159 = vpop.f32.mrf.mxu0
    %v160 = vadd.f32 %v116, %v159
    %161 = vmatmul.f32.gmra.mxu0 %v122
    %v162 = vpop.f32.mrf.mxu0
    %v163 = vadd.f32 %v116, %v162
    %164 = vmatmul.f32.gmra.mxu0 %v125
    %v165 = vpop.f32.mrf.mxu0
    %v166 = vadd.f32 %v116, %v165
    %167 = vmatmul.f32.gmra.mxu0 %v128
    %v168 = vpop.f32.mrf.mxu0
    %v169 = vadd.f32 %v116, %v168
    %170 = vmatmul.f32.gmra.mxu0 %v131
    %v171 = vpop.f32.mrf.mxu0
    %v172 = vadd.f32 %v116, %v171
    %173 = vmatmul.f32.gmra.mxu0 %v134
    %v174 = vpop.f32.mrf.mxu0
    %v175 = vadd.f32 %v116, %v174
    %176 = vmatmul.f32.gmra.mxu0 %v137
    %v177 = vpop.f32.mrf.mxu0
    %v178 = vadd.f32 %v116, %v177
    %179 = vmatmul.f32.gmra.mxu0 %v140
    %v180 = vpop.f32.mrf.mxu0
    %v181 = vadd.f32 %v116, %v180
    %182 = vdwg.mxu0
    %v183 = vmax.f32 %v160, 0.0
    %v184 = vmax.f32 %v163, 0.0
    %v185 = vmax.f32 %v166, 0.0
    %v186 = vmax.f32 %v169, 0.0
    %v187 = vmax.f32 %v172, 0.0
    %v188 = vmax.f32 %v175, 0.0
    %v189 = vmax.f32 %v178, 0.0
    %v190 = vmax.f32 %v181, 0.0
    %v191 = vld [vmem:[#allocation2 + $0x10] sm:$0xff]
    %v192 = vld [vmem:[#allocation2 + $0x28] sm:$0xff]
    %v193 = vld [vmem:[#allocation2 + $0x40] sm:$0xff]
    %v194 = vld [vmem:[#allocation2 + $0x58] sm:$0xff]
    %v195 = vld [vmem:[#allocation2 + $0x70] ss:$0 sm:$0xff]
    %v197 = vsel %vm117, %v183, 0
    %v200 = vsel %vm117, %v184, 0
    %v203 = vsel %vm117, %v185, 0
    %v206 = vsel %vm117, %v186, 0
    %v209 = vsel %vm117, %v187, 0
    %v212 = vsel %vm117, %v188, 0
    %v215 = vsel %vm117, %v189, 0
    %v218 = vsel %vm117, %v190, 0
    %220 = vmatpush.msra.mxu0 0.0
    %221 = vmatpush.msra.mxu0 0.0
    %222 = vmatpush.msra.mxu0 0.0
    %223 = vmatpush.msra.mxu0 0.0
    %224 = vmatpush.msra.mxu0 0.0
    %225 = vmatpush.msra.mxu0 0.0
    %226 = vmatpush.msra.mxu0 0.0
    %227 = vmatpush.msra.mxu0 0.0
    %228 = vmatpush.msra.mxu0 0.0
    %229 = vmatpush.msra.mxu0 0.0
    %230 = vmatpush.msra.mxu0 0.0
    %231 = vmatpush.msra.mxu0 0.0
    %232 = vmatpush.msra.mxu0 %v194
    %233 = vmatpush.msra.mxu0 %v193
    %234 = vmatpush.msra.mxu0 %v192
    %235 = vmatpush.msra.mxu0 %v191
    %236 = vmatmul.f32.gmra.mxu0 %v197
    %v237 = vpop.f32.mrf.mxu0
    %v238 = vadd.f32 %v195, %v237
    %239 = vmatmul.f32.gmra.mxu0 %v200
    %v240 = vpop.f32.mrf.mxu0
    %v241 = vadd.f32 %v195, %v240
    %242 = vmatmul.f32.gmra.mxu0 %v203
    %v243 = vpop.f32.mrf.mxu0
    %v244 = vadd.f32 %v195, %v243
    %245 = vmatmul.f32.gmra.mxu0 %v206
    %v246 = vpop.f32.mrf.mxu0
    %v247 = vadd.f32 %v195, %v246
    %248 = vmatmul.f32.gmra.mxu0 %v209
    %v249 = vpop.f32.mrf.mxu0
    %v250 = vadd.f32 %v195, %v249
    %251 = vmatmul.f32.gmra.mxu0 %v212
    %v252 = vpop.f32.mrf.mxu0
    %v253 = vadd.f32 %v195, %v252
    %254 = vmatmul.f32.gmra.mxu0 %v215
    %v255 = vpop.f32.mrf.mxu0
    %v256 = vadd.f32 %v195, %v255
    %257 = vmatmul.f32.gmra.mxu0 %v218
    %v258 = vpop.f32.mrf.mxu0
    %v259 = vadd.f32 %v195, %v258
    %260 = vdwg.mxu0
    %261 = vst.msk [vmem:[%s2] sm:$0xff] %vm38, %v238
    %262 = vst.msk [vmem:[%s2 + $0x8] sm:$0xff] %vm38, %v241
    %263 = vst.msk [vmem:[%s2 + $0x10] sm:$0xff] %vm38, %v244
    %264 = vst.msk [vmem:[%s2 + $0x18] sm:$0xff] %vm38, %v247
    %265 = vst.msk [vmem:[%s2 + $0x20] sm:$0xff] %vm38, %v250
    %266 = vst.msk [vmem:[%s2 + $0x28] sm:$0xff] %vm38, %v253
    %267 = vst.msk [vmem:[%s2 + $0x30] sm:$0xff] %vm38, %v256
    %268 = vst.msk [vmem:[%s2 + $0x38] sm:$0xff] %vm38, %v259
    // Predicated region
    $region14: #{encoder_forward.1} parent=1 // pred_check
      _
    $region15: #{encoder_forward.1} parent=1 // pred_check_branch
      %270 = sbr.rel (0) target = $region17
    $region16: #{encoder_forward.1} parent=1 // pred_region
      _
    $region17: #{encoder_forward.1} parent=1 // pred_fallthru
      _
    // Predicated region
    $region18: #{encoder_forward.1} parent=1 // pred_check
      _
    $region19: #{encoder_forward.1} parent=1 // pred_check_branch
      %272 = sbr.rel (0) target = $region21
    $region20: #{encoder_forward.1} parent=1 // pred_region
      _
    $region21: #{encoder_forward.1} parent=1 // pred_fallthru
      _
    %273 = vsyncpa [#allocation3], 1

</llo_original>
